<compile_context>
chip_gen: v7x
topology: tpu7x:2x2x1
jax: 0.10.0
libtpu: 0.0.40
codegen_flags: <defaults>
</compile_context>

<pallas_src>
import math

import jax
import jax.numpy as jnp
from jax.experimental import pallas as pl
from jax.experimental.pallas import tpu as pltpu

_MM_DT = jnp.bfloat16                      # MXU operand dtype (accumulation stays f32)
_VMEM_LIMIT_BYTES = 56 * 1024 * 1024       # safe on v5e/v6e (128 MiB) and v7x (64 MiB)


# ---------------------------------------------------------------------------
# in-kernel helpers (also valid on plain arrays, reused by the reference)
# ---------------------------------------------------------------------------
def _layernorm(x, gamma, beta, eps=1e-6):
    mu = jnp.mean(x, axis=-1, keepdims=True)
    xc = x - mu
    var = jnp.mean(xc * xc, axis=-1, keepdims=True)
    return xc * jax.lax.rsqrt(var + eps) * gamma + beta


def _mm(a, w):
    """activation @ weight on the MXU; weight is already bf16, f32 accumulation."""
    return jnp.dot(a.astype(_MM_DT), w.astype(_MM_DT),
                   preferred_element_type=jnp.float32)


def _mm_nt(a, b):
    """a @ b.T (contraction over the last axis of both), bf16 operands, f32 acc.
    NOTE(review): verify in the bundle dump that this does not emit a per-step
    vxpose of the K tile; if it does, switch to pl.dot(..., trans_b=True)."""
    return jax.lax.dot_general(a.astype(_MM_DT), b.astype(_MM_DT),
                               (((1,), (1,)), ((), ())),
                               preferred_element_type=jnp.float32)


# ---------------------------------------------------------------------------
# kernel 1: PPA (masked cross-attention prompt <- prior), runs once.
# Emits the block's prompt K/V rows directly (they are all the block needs).
# ---------------------------------------------------------------------------
def _ppa_kernel(prompt_ref, prior_ref, mask_ref,
                ppa_wq_ref, ppa_wkv_ref, ppa_wo_ref,
                g1_ref, b1_ref, wkv_ref,
                kp_ref, vp_ref):
    prompt = prompt_ref[...]                              # (P, C) f32
    prior = prior_ref[...]                                # (M, C) f32
    c = prompt.shape[-1]
    scale = 1.0 / math.sqrt(c)

    q = _mm(prompt, ppa_wq_ref[...])                      # (P, C)
    kv = _mm(prior, ppa_wkv_ref[...])                     # (M, 2C) fused K/V proj
    s = _mm_nt(q, kv[:, :c]) * scale + mask_ref[...]      # (P, M) f32
    # exact softmax (tiny).  A fully-masked row would give a uniform distribution,
    # not zeros — the synthetic mask guarantees no such rows (review concern).
    m = jnp.max(s, axis=-1, keepdims=True)
    e = jnp.exp(s - m)
    attn = e / jnp.sum(e, axis=-1, keepdims=True)
    o = _mm(attn, kv[:, c:])                              # (P, C)
    new_prompt = prompt + _mm(o, ppa_wo_ref[...])         # prompt_emb + ppa(...)

    # block-side K/V of the prompt rows (pre-LN with the block's LN1 params)
    pn = _layernorm(new_prompt, g1_ref[...], b1_ref[...])
    kvp = _mm(pn, wkv_ref[...])                           # (P, 2C) f32
    kp_ref[...] = kvp[:, :c].astype(kp_ref.dtype)
    vp_ref[...] = kvp[:, c:].astype(vp_ref.dtype)


def _ppa_prompt_kv(wp):
    P, C = wp["prompt"].shape
    c2 = lambda a: pl.BlockSpec(a.shape, lambda i: (0, 0))
    return pl.pallas_call(
        _ppa_kernel,
        out_shape=(jax.ShapeDtypeStruct((P, C), _MM_DT),
                   jax.ShapeDtypeStruct((P, C), _MM_DT)),
        grid=(1,),
        in_specs=[c2(wp["prompt"]), c2(wp["prior"]), c2(wp["mask_add"]),
                  c2(wp["ppa_wq"]), c2(wp["ppa_wkv"]), c2(wp["ppa_wo"]),
                  c2(wp["g1"]), c2(wp["b1"]), c2(wp["wkv"])],
        out_specs=(pl.BlockSpec((P, C), lambda i: (0, 0)),
                   pl.BlockSpec((P, C), lambda i: (0, 0))),
        compiler_params=pltpu.CompilerParams(
            dimension_semantics=("arbitrary",)),
    )(wp["prompt"], wp["prior"], wp["mask_add"],
      wp["ppa_wq"], wp["ppa_wkv"], wp["ppa_wo"],
      wp["g1"], wp["b1"], wp["wkv"])


# ---------------------------------------------------------------------------
# kernel 2: block as flash attention + fused row-tiled MLP.
# grid = (B, N/tq, N/tk);   KV axis is the innermost (reduction) axis.
# ---------------------------------------------------------------------------
def _block_kernel(xq_ref, xkv_ref, kp_ref, vp_ref,
                  wq_ref, wkv_ref, wo_ref,
                  g1_ref, b1_ref, g2_ref, b2_ref,
                  w1_ref, bw1_ref, w2_ref, bw2_ref,
                  out_ref,
                  q_scr, m_scr, l_scr, acc_scr):
    c = xq_ref.shape[-1]
    scale = 1.0 / math.sqrt(c)
    ki = pl.program_id(2)

    # ---- first KV tile for this (batch, q-tile): project Q once, reset state --
    @pl.when(ki == 0)
    def _init():
        qn = _layernorm(xq_ref[0], g1_ref[...], b1_ref[...])       # (tq, C) f32
        q_scr[...] = (_mm(qn, wq_ref[...]) * scale).astype(_MM_DT)  # pre-scaled q
        m_scr[...] = jnp.full(m_scr.shape, -jnp.inf, m_scr.dtype)
        l_scr[...] = jnp.zeros(l_scr.shape, l_scr.dtype)
        acc_scr[...] = jnp.zeros(acc_scr.shape, acc_scr.dtype)

    # ---- every KV tile: LN + fused K/V projection + online-softmax update -----
    kvn = _layernorm(xkv_ref[0], g1_ref[...], b1_ref[...])          # (tk, C) f32
    kv = _mm(kvn, wkv_ref[...])                                     # (tk, 2C) f32
    k = kv[:, :c].astype(_MM_DT)                                    # 128-aligned slice
    v = kv[:, c:].astype(_MM_DT)
    s = _mm_nt(q_scr[...], k)                                       # (tq, tk) f32, scores f32

    m_prev = m_scr[...]
    m_new = jnp.maximum(m_prev, jnp.max(s, axis=-1, keepdims=True))
    alpha = jnp.exp(m_prev - m_new)
    p = jnp.exp(s - m_new)
    l_scr[...] = alpha * l_scr[...] + jnp.sum(p, axis=-1, keepdims=True)
    acc_scr[...] = alpha * acc_scr[...] + jnp.dot(
        p.astype(_MM_DT), v, preferred_element_type=jnp.float32)
    m_scr[...] = m_new

    # ---- last KV tile: prompt columns, finalize, residual, MLP, store ---------
    @pl.when(ki == pl.num_programs(2) - 1)
    def _finalize():
        sp = _mm_nt(q_scr[...], kp_ref[...])                        # (tq, P) f32
        m_prev2 = m_scr[...]
        m_fin = jnp.maximum(m_prev2, jnp.max(sp, axis=-1, keepdims=True))
        alpha2 = jnp.exp(m_prev2 - m_fin)
        pp = jnp.exp(sp - m_fin)
        l_fin = alpha2 * l_scr[...] + jnp.sum(pp, axis=-1, keepdims=True)
        acc = alpha2 * acc_scr[...] + jnp.dot(
            pp.astype(_MM_DT), vp_ref[...], preferred_element_type=jnp.float32)

        o = acc * (1.0 / l_fin)                 # exact final normalization (review)
        h = xq_ref[0] + _mm(o, wo_ref[...])     # residual stays on-chip

        hn = _layernorm(h, g2_ref[...], b2_ref[...])
        mlp = jax.nn.gelu(_mm(hn, w1_ref[...]) + bw1_ref[...], approximate=True)
        mlp = _mm(mlp, w2_ref[...]) + bw2_ref[...]
        out_ref[0] = (h + mlp).astype(out_ref.dtype)


# ---------------------------------------------------------------------------
# WrappedBlock forward (mirrors the PyTorch module)
# ---------------------------------------------------------------------------
def wrapped_block_forward(x, H, W, wp, *, tq=256, tk=512, out_dtype=None):
    """x: (B, N, C) tokens -> (B, N, C).

    The BHWC view used by the PyTorch block is a pure reshape of the token layout
    (no conv in this module), so tokens stay in (B, N, C) throughout.
    `wp` is the prepared (fused + bf16-cast) weight dict from `prepare_weights`.
    """
    bs, n, c = x.shape
    assert n == H * W
    tq, tk = min(tq, n), min(tk, n)
    assert n % tq == 0 and n % tk == 0
    assert c % 128 == 0, "keep the channel dim lane-dense (multiple of 128)"
    out_dtype = out_dtype or x.dtype

    # PPA once (batch-independent): prompt K/V rows in bf16, ~2*P*C values.
    kp, vp = _ppa_prompt_kv(wp)

    const2d = lambda a: pl.BlockSpec(a.shape, lambda b, qi, ki: (0, 0))

    return pl.pallas_call(
        _block_kernel,
        out_shape=jax.ShapeDtypeStruct((bs, n, c), out_dtype),
        grid=(bs, n // tq, n // tk),
        in_specs=[
            pl.BlockSpec((1, tq, c), lambda b, qi, ki: (b, qi, 0)),   # x: query rows
            pl.BlockSpec((1, tk, c), lambda b, qi, ki: (b, ki, 0)),   # x: KV rows
            const2d(kp), const2d(vp),
            const2d(wp["wq"]), const2d(wp["wkv"]), const2d(wp["wo"]),
            const2d(wp["g1"]), const2d(wp["b1"]),
            const2d(wp["g2"]), const2d(wp["b2"]),
            const2d(wp["w1"]), const2d(wp["bw1"]),
            const2d(wp["w2"]), const2d(wp["bw2"]),
        ],
        out_specs=pl.BlockSpec((1, tq, c), lambda b, qi, ki: (b, qi, 0)),
        scratch_shapes=[
            pltpu.VMEM((tq, c), _MM_DT),         # pre-scaled Q tile (bf16)
            pltpu.VMEM((tq, 1), jnp.float32),    # running max m
            pltpu.VMEM((tq, 1), jnp.float32),    # running denom l
            pltpu.VMEM((tq, c), jnp.float32),    # unnormalized output acc
        ],
        compiler_params=pltpu.CompilerParams(
            dimension_semantics=("parallel", "parallel", "arbitrary"),
            vmem_limit_bytes=_VMEM_LIMIT_BYTES),
    )(x, x, kp, vp,
      wp["wq"], wp["wkv"], wp["wo"], wp["g1"], wp["b1"],
      wp["g2"], wp["b2"], wp["w1"], wp["bw1"], wp["w2"], wp["bw2"])


# ---------------------------------------------------------------------------
# one-time weight preparation (fusion + bf16 cast, out of the per-call hot path)
# ---------------------------------------------------------------------------
def prepare_weights(p):
    bf = lambda a: a.astype(_MM_DT)
    return dict(
        prompt=p["prompt_emb"][0],                                        # (P, C) f32
        prior=p["prior"], mask_add=p["mask_add"],
        ppa_wq=bf(p["ppa_wq"]),
        ppa_wkv=bf(jnp.concatenate([p["ppa_wk"], p["ppa_wv"]], axis=1)),  # (C, 2C)
        ppa_wo=bf(p["ppa_wo"]),
        g1=p["g1"], b1=p["b1"], g2=p["g2"], b2=p["b2"],
        wq=bf(p["wq"]),
        wkv=bf(jnp.concatenate([p["wk"], p["wv"]], axis=1)),              # (C, 2C)
        wo=bf(p["wo"]),
        w1=bf(p["w1"]), bw1=p["bw1"], w2=bf(p["w2"]), bw2=p["bw2"],
    )


# ---------------------------------------------------------------------------
# pure-JAX reference (f32, exact softmax) for correctness checking
# ---------------------------------------------------------------------------
def wrapped_block_reference(x, H, W, p):
    bs, n, c = x.shape
    prompt = p["prompt_emb"][0]
    q = prompt @ p["ppa_wq"]; k = p["prior"] @ p["ppa_wk"]; v = p["prior"] @ p["ppa_wv"]
    s = q @ k.T / math.sqrt(c) + p["mask_add"]
    new_prompt = (jax.nn.softmax(s, axis=-1) @ v) @ p["ppa_wo"]
    prompt_bs = jnp.broadcast_to(p["prompt_emb"] + new_prompt[None],
                                 (bs,) + p["prompt_emb"].shape[1:])
    x_tok = x.reshape(bs, H * W, c)
    kv = jnp.concatenate([x_tok, prompt_bs], axis=1)
    xn = _layernorm(x_tok, p["g1"], p["b1"])
    kvn = _layernorm(kv, p["g1"], p["b1"])
    qq = xn @ p["wq"]; kk = kvn @ p["wk"]; vv = kvn @ p["wv"]
    ss = jnp.einsum("bnc,bmc->bnm", qq, kk) / math.sqrt(c)
    o = jnp.einsum("bnm,bmc->bnc", jax.nn.softmax(ss, axis=-1), vv) @ p["wo"]
    h = x_tok + o
    m = _layernorm(h, p["g2"], p["b2"])
    m = jax.nn.gelu(m @ p["w1"] + p["bw1"], approximate=True) @ p["w2"] + p["bw2"]
    return (h + m).reshape(bs, n, c)


def make_params(key, C, P, M, hidden):
    keys = jax.random.split(key, 12)
    nrm = lambda k, s: (0.02 * jax.random.normal(k, s)).astype(jnp.float32)
    # deterministic boolean mask -> additive mask (no fully-masked rows)
    pi = jnp.arange(P)[:, None]
    mi = jnp.arange(M)[None, :]
    keep = ((pi + mi) % 3 != 0) | (mi == 0)
    mask_add = jnp.where(keep, 0.0, -1e9).astype(jnp.float32)
    return dict(
        prompt_emb=nrm(keys[0], (1, P, C)),
        prior=nrm(keys[1], (M, C)),
        mask_add=mask_add,
        ppa_wq=nrm(keys[2], (C, C)), ppa_wk=nrm(keys[3], (C, C)),
        ppa_wv=nrm(keys[4], (C, C)), ppa_wo=nrm(keys[5], (C, C)),
        g1=jnp.ones((1, C), jnp.float32), b1=jnp.zeros((1, C), jnp.float32),
        wq=nrm(keys[6], (C, C)), wk=nrm(keys[7], (C, C)),
        wv=nrm(keys[8], (C, C)), wo=nrm(keys[9], (C, C)),
        g2=jnp.ones((1, C), jnp.float32), b2=jnp.zeros((1, C), jnp.float32),
        w1=nrm(keys[10], (C, hidden)), bw1=jnp.zeros((1, hidden), jnp.float32),
        w2=nrm(keys[11], (hidden, C)), bw2=jnp.zeros((1, C), jnp.float32),
    )


if __name__ == "__main__":
    # small but lane-dense demo shapes: N = 16*16 = 256 tokens, C = 128 channels
    bs, H, W, C = 2, 16, 16, 128
    N = H * W
    P, M, hidden = 8, 16, 4 * C

    key = jax.random.PRNGKey(0)
    kx, kw = jax.random.split(key)
    x = jax.random.normal(kx, (bs, N, C), dtype=jnp.float32)
    params = make_params(kw, C, P, M, hidden)
    weights = prepare_weights(params)          # one-time fusion + bf16 cast

    # tq=tk=128 so the small demo still exercises the multi-tile KV loop
    # (production defaults are tq=256 / tk=512 for the 256x256 MXU on v6e/v7x).
    out = wrapped_block_forward(x, H, W, weights, tq=128, tk=128)
    out = jax.block_until_ready(out)
    assert out.shape == (bs, N, C), out.shape

    ref = wrapped_block_reference(x, H, W, params)
    err = float(jnp.max(jnp.abs(out - ref)))
    assert jnp.allclose(out, ref, atol=2e-2, rtol=2e-2), err

    print("KERNEL_OK")
</pallas_src>

<mosaic_0001>
module attributes {stable_mosaic.version = 11 : i64} {
  func.func @_ppa_kernel(%arg0: i32, %arg1: memref<8x128xf32, #tpu.memory_space<vmem>>, %arg2: memref<16x128xf32, #tpu.memory_space<vmem>>, %arg3: memref<8x16xf32, #tpu.memory_space<vmem>>, %arg4: memref<128x128xbf16, #tpu.memory_space<vmem>>, %arg5: memref<128x256xbf16, #tpu.memory_space<vmem>>, %arg6: memref<128x128xbf16, #tpu.memory_space<vmem>>, %arg7: memref<1x128xf32, #tpu.memory_space<vmem>>, %arg8: memref<1x128xf32, #tpu.memory_space<vmem>>, %arg9: memref<128x256xbf16, #tpu.memory_space<vmem>>, %arg10: memref<8x128xbf16, #tpu.memory_space<vmem>>, %arg11: memref<8x128xbf16, #tpu.memory_space<vmem>>) attributes {dimension_semantics = [#tpu.dimension_semantics<arbitrary>], iteration_bounds = array<i64: 1>, scalar_prefetch = 0 : i64, scratch_operands = 0 : i64, tpu.core_type = #tpu.core_type<tc>, window_params = [{pipeline_mode = #tpu.pipeline_mode<synchronous>, transform_indices = @transform_0, window_bounds = array<i64: 8, 128>}, {pipeline_mode = #tpu.pipeline_mode<synchronous>, transform_indices = @transform_1, window_bounds = array<i64: 16, 128>}, {pipeline_mode = #tpu.pipeline_mode<synchronous>, transform_indices = @transform_2, window_bounds = array<i64: 8, 16>}, {pipeline_mode = #tpu.pipeline_mode<synchronous>, transform_indices = @transform_3, window_bounds = array<i64: 128, 128>}, {pipeline_mode = #tpu.pipeline_mode<synchronous>, transform_indices = @transform_4, window_bounds = array<i64: 128, 256>}, {pipeline_mode = #tpu.pipeline_mode<synchronous>, transform_indices = @transform_5, window_bounds = array<i64: 128, 128>}, {pipeline_mode = #tpu.pipeline_mode<synchronous>, transform_indices = @transform_6, window_bounds = array<i64: 1, 128>}, {pipeline_mode = #tpu.pipeline_mode<synchronous>, transform_indices = @transform_7, window_bounds = array<i64: 1, 128>}, {pipeline_mode = #tpu.pipeline_mode<synchronous>, transform_indices = @transform_8, window_bounds = array<i64: 128, 256>}, {pipeline_mode = #tpu.pipeline_mode<synchronous>, transform_indices = @transform_9, window_bounds = array<i64: 8, 128>}, {pipeline_mode = #tpu.pipeline_mode<synchronous>, transform_indices = @transform_10, window_bounds = array<i64: 8, 128>}]} {
    %c0 = arith.constant 0 : index
    %c0_0 = arith.constant 0 : index
    %0 = vector.load %arg1[%c0, %c0_0] : memref<8x128xf32, #tpu.memory_space<vmem>>, vector<8x128xf32>
    %c0_1 = arith.constant 0 : index
    %c0_2 = arith.constant 0 : index
    %1 = vector.load %arg2[%c0_1, %c0_2] : memref<16x128xf32, #tpu.memory_space<vmem>>, vector<16x128xf32>
    %c0_3 = arith.constant 0 : index
    %c0_4 = arith.constant 0 : index
    %2 = vector.load %arg4[%c0_3, %c0_4] : memref<128x128xbf16, #tpu.memory_space<vmem>>, vector<128x128xbf16>
    %3 = arith.truncf %0 : vector<8x128xf32> to vector<8x128xbf16>
    %cst = arith.constant dense<0.000000e+00> : vector<8x128xf32>
    %4 = tpu.matmul %3, %2, %cst {dimension_numbers = #tpu.dot_dimension_numbers<[1], [0], [0], [1], [0, 0, 1, 1], [], []>} : vector<8x128xbf16>, vector<128x128xbf16>, vector<8x128xf32> -> vector<8x128xf32>
    %c0_5 = arith.constant 0 : index
    %c0_6 = arith.constant 0 : index
    %5 = vector.load %arg5[%c0_5, %c0_6] : memref<128x256xbf16, #tpu.memory_space<vmem>>, vector<128x256xbf16>
    %6 = arith.truncf %1 : vector<16x128xf32> to vector<16x128xbf16>
    %cst_7 = arith.constant dense<0.000000e+00> : vector<16x256xf32>
    %7 = tpu.matmul %6, %5, %cst_7 {dimension_numbers = #tpu.dot_dimension_numbers<[1], [0], [0], [1], [0, 0, 1, 1], [], []>} : vector<16x128xbf16>, vector<128x256xbf16>, vector<16x256xf32> -> vector<16x256xf32>
    %8 = vector.extract_strided_slice %7 {offsets = [0, 0], sizes = [16, 128], strides = [1, 1]} : vector<16x256xf32> to vector<16x128xf32>
    %9 = arith.truncf %4 : vector<8x128xf32> to vector<8x128xbf16>
    %10 = arith.truncf %8 : vector<16x128xf32> to vector<16x128xbf16>
    %cst_8 = arith.constant dense<0.000000e+00> : vector<8x16xf32>
    %11 = tpu.matmul %9, %10, %cst_8 {dimension_numbers = #tpu.dot_dimension_numbers<[1], [1], [0], [0], [0, 0, 1, 0], [], []>} : vector<8x128xbf16>, vector<16x128xbf16>, vector<8x16xf32> -> vector<8x16xf32>
    %cst_9 = arith.constant 0.0883883461 : f32
    %12 = vector.broadcast %cst_9 : f32 to vector<8x16xf32>
    %13 = arith.mulf %11, %12 : vector<8x16xf32>
    %c0_10 = arith.constant 0 : index
    %c0_11 = arith.constant 0 : index
    %14 = vector.load %arg3[%c0_10, %c0_11] : memref<8x16xf32, #tpu.memory_space<vmem>>, vector<8x16xf32>
    %15 = arith.addf %13, %14 : vector<8x16xf32>
    %cst_12 = arith.constant dense<0xFF800000> : vector<8xf32>
    %16 = vector.multi_reduction <maximumf>, %15, %cst_12 [1] : vector<8x16xf32> to vector<8xf32>
    %17 = vector.shape_cast %16 : vector<8xf32> to vector<8x1xf32>
    %18 = vector.broadcast %17 : vector<8x1xf32> to vector<8x16xf32>
    %19 = arith.subf %15, %18 : vector<8x16xf32>
    %20 = math.exp %19 : vector<8x16xf32>
    %cst_13 = arith.constant dense<0.000000e+00> : vector<8xf32>
    %21 = vector.multi_reduction <add>, %20, %cst_13 [1] : vector<8x16xf32> to vector<8xf32>
    %22 = vector.shape_cast %21 : vector<8xf32> to vector<8x1xf32>
    %23 = vector.broadcast %22 : vector<8x1xf32> to vector<8x16xf32>
    %24 = arith.divf %20, %23 : vector<8x16xf32>
    %25 = vector.extract_strided_slice %7 {offsets = [0, 128], sizes = [16, 128], strides = [1, 1]} : vector<16x256xf32> to vector<16x128xf32>
    %26 = arith.truncf %24 : vector<8x16xf32> to vector<8x16xbf16>
    %27 = arith.truncf %25 : vector<16x128xf32> to vector<16x128xbf16>
    %cst_14 = arith.constant dense<0.000000e+00> : vector<8x128xf32>
    %28 = tpu.matmul %26, %27, %cst_14 {dimension_numbers = #tpu.dot_dimension_numbers<[1], [0], [0], [1], [0, 0, 1, 1], [], []>} : vector<8x16xbf16>, vector<16x128xbf16>, vector<8x128xf32> -> vector<8x128xf32>
    %c0_15 = arith.constant 0 : index
    %c0_16 = arith.constant 0 : index
    %29 = vector.load %arg6[%c0_15, %c0_16] : memref<128x128xbf16, #tpu.memory_space<vmem>>, vector<128x128xbf16>
    %30 = arith.truncf %28 : vector<8x128xf32> to vector<8x128xbf16>
    %cst_17 = arith.constant dense<0.000000e+00> : vector<8x128xf32>
    %31 = tpu.matmul %30, %29, %cst_17 {dimension_numbers = #tpu.dot_dimension_numbers<[1], [0], [0], [1], [0, 0, 1, 1], [], []>} : vector<8x128xbf16>, vector<128x128xbf16>, vector<8x128xf32> -> vector<8x128xf32>
    %32 = arith.addf %0, %31 : vector<8x128xf32>
    %c0_18 = arith.constant 0 : index
    %c0_19 = arith.constant 0 : index
    %33 = vector.load %arg7[%c0_18, %c0_19] : memref<1x128xf32, #tpu.memory_space<vmem>>, vector<1x128xf32>
    %c0_20 = arith.constant 0 : index
    %c0_21 = arith.constant 0 : index
    %34 = vector.load %arg8[%c0_20, %c0_21] : memref<1x128xf32, #tpu.memory_space<vmem>>, vector<1x128xf32>
    %cst_22 = arith.constant dense<0.000000e+00> : vector<8xf32>
    %35 = vector.multi_reduction <add>, %32, %cst_22 [1] : vector<8x128xf32> to vector<8xf32>
    %36 = vector.shape_cast %35 : vector<8xf32> to vector<8x1xf32>
    %cst_23 = arith.constant 1.280000e+02 : f32
    %37 = vector.broadcast %cst_23 : f32 to vector<8x1xf32>
    %38 = arith.divf %36, %37 : vector<8x1xf32>
    %39 = vector.broadcast %38 : vector<8x1xf32> to vector<8x128xf32>
    %40 = arith.subf %32, %39 : vector<8x128xf32>
    %41 = arith.mulf %40, %40 : vector<8x128xf32>
    %cst_24 = arith.constant dense<0.000000e+00> : vector<8xf32>
    %42 = vector.multi_reduction <add>, %41, %cst_24 [1] : vector<8x128xf32> to vector<8xf32>
    %43 = vector.shape_cast %42 : vector<8xf32> to vector<8x1xf32>
    %cst_25 = arith.constant 1.280000e+02 : f32
    %44 = vector.broadcast %cst_25 : f32 to vector<8x1xf32>
    %45 = arith.divf %43, %44 : vector<8x1xf32>
    %cst_26 = arith.constant 9.99999997E-7 : f32
    %46 = vector.broadcast %cst_26 : f32 to vector<8x1xf32>
    %47 = arith.addf %45, %46 : vector<8x1xf32>
    %48 = math.rsqrt %47 : vector<8x1xf32>
    %49 = vector.broadcast %48 : vector<8x1xf32> to vector<8x128xf32>
    %50 = arith.mulf %40, %49 : vector<8x128xf32>
    %51 = vector.broadcast %33 : vector<1x128xf32> to vector<8x128xf32>
    %52 = arith.mulf %50, %51 : vector<8x128xf32>
    %53 = vector.broadcast %34 : vector<1x128xf32> to vector<8x128xf32>
    %54 = arith.addf %52, %53 : vector<8x128xf32>
    %c0_27 = arith.constant 0 : index
    %c0_28 = arith.constant 0 : index
    %55 = vector.load %arg9[%c0_27, %c0_28] : memref<128x256xbf16, #tpu.memory_space<vmem>>, vector<128x256xbf16>
    %56 = arith.truncf %54 : vector<8x128xf32> to vector<8x128xbf16>
    %cst_29 = arith.constant dense<0.000000e+00> : vector<8x256xf32>
    %57 = tpu.matmul %56, %55, %cst_29 {dimension_numbers = #tpu.dot_dimension_numbers<[1], [0], [0], [1], [0, 0, 1, 1], [], []>} : vector<8x128xbf16>, vector<128x256xbf16>, vector<8x256xf32> -> vector<8x256xf32>
    %58 = vector.extract_strided_slice %57 {offsets = [0, 0], sizes = [8, 128], strides = [1, 1]} : vector<8x256xf32> to vector<8x128xf32>
    %59 = arith.truncf %58 : vector<8x128xf32> to vector<8x128xbf16>
    %c0_30 = arith.constant 0 : index
    %c0_31 = arith.constant 0 : index
    %60 = vector.load %arg10[%c0_30, %c0_31] : memref<8x128xbf16, #tpu.memory_space<vmem>>, vector<8x128xbf16>
    tpu.vector_store %arg10[%c0_30, %c0_31], %59 {strides = array<i32>} : memref<8x128xbf16, #tpu.memory_space<vmem>>, vector<8x128xbf16>,
    %61 = vector.extract_strided_slice %57 {offsets = [0, 128], sizes = [8, 128], strides = [1, 1]} : vector<8x256xf32> to vector<8x128xf32>
    %62 = arith.truncf %61 : vector<8x128xf32> to vector<8x128xbf16>
    %c0_32 = arith.constant 0 : index
    %c0_33 = arith.constant 0 : index
    %63 = vector.load %arg11[%c0_32, %c0_33] : memref<8x128xbf16, #tpu.memory_space<vmem>>, vector<8x128xbf16>
    tpu.vector_store %arg11[%c0_32, %c0_33], %62 {strides = array<i32>} : memref<8x128xbf16, #tpu.memory_space<vmem>>, vector<8x128xbf16>,
    return
  }
  func.func @transform_0(%arg0: i32) -> (i32, i32) {
    %c0_i32 = arith.constant 0 : i32
    %c0_i32_0 = arith.constant 0 : i32
    %c0_i32_1 = arith.constant 0 : i32
    return %c0_i32, %c0_i32_0 : i32, i32
  }
  func.func @transform_1(%arg0: i32) -> (i32, i32) {
    %c0_i32 = arith.constant 0 : i32
    %c0_i32_0 = arith.constant 0 : i32
    %c0_i32_1 = arith.constant 0 : i32
    return %c0_i32, %c0_i32_0 : i32, i32
  }
  func.func @transform_2(%arg0: i32) -> (i32, i32) {
    %c0_i32 = arith.constant 0 : i32
    %c0_i32_0 = arith.constant 0 : i32
    %c0_i32_1 = arith.constant 0 : i32
    return %c0_i32, %c0_i32_0 : i32, i32
  }
  func.func @transform_3(%arg0: i32) -> (i32, i32) {
    %c0_i32 = arith.constant 0 : i32
    %c0_i32_0 = arith.constant 0 : i32
    %c0_i32_1 = arith.constant 0 : i32
    return %c0_i32, %c0_i32_0 : i32, i32
  }
  func.func @transform_4(%arg0: i32) -> (i32, i32) {
    %c0_i32 = arith.constant 0 : i32
    %c0_i32_0 = arith.constant 0 : i32
    %c0_i32_1 = arith.constant 0 : i32
    return %c0_i32, %c0_i32_0 : i32, i32
  }
  func.func @transform_5(%arg0: i32) -> (i32, i32) {
    %c0_i32 = arith.constant 0 : i32
    %c0_i32_0 = arith.constant 0 : i32
    %c0_i32_1 = arith.constant 0 : i32
    return %c0_i32, %c0_i32_0 : i32, i32
  }
  func.func @transform_6(%arg0: i32) -> (i32, i32) {
    %c0_i32 = arith.constant 0 : i32
    %c0_i32_0 = arith.constant 0 : i32
    %c0_i32_1 = arith.constant 0 : i32
    return %c0_i32, %c0_i32_0 : i32, i32
  }
  func.func @transform_7(%arg0: i32) -> (i32, i32) {
    %c0_i32 = arith.constant 0 : i32
    %c0_i32_0 = arith.constant 0 : i32
    %c0_i32_1 = arith.constant 0 : i32
    return %c0_i32, %c0_i32_0 : i32, i32
  }
  func.func @transform_8(%arg0: i32) -> (i32, i32) {
    %c0_i32 = arith.constant 0 : i32
    %c0_i32_0 = arith.constant 0 : i32
    %c0_i32_1 = arith.constant 0 : i32
    return %c0_i32, %c0_i32_0 : i32, i32
  }
  func.func @transform_9(%arg0: i32) -> (i32, i32) {
    %c0_i32 = arith.constant 0 : i32
    %c0_i32_0 = arith.constant 0 : i32
    %c0_i32_1 = arith.constant 0 : i32
    return %c0_i32, %c0_i32_0 : i32, i32
  }
  func.func @transform_10(%arg0: i32) -> (i32, i32) {
    %c0_i32 = arith.constant 0 : i32
    %c0_i32_0 = arith.constant 0 : i32
    %c0_i32_1 = arith.constant 0 : i32
    return %c0_i32, %c0_i32_0 : i32, i32
  }
}

</mosaic_0001>

<llo_original>
// kernel: tpu_custom_call.1
$region0: #{tpu_custom_call.1}
  #allocation0 [shape = 'u32[]', space=smem, size = 0x4, offset = 0x4, fixed_abs, tag = 'smem constant byte address 0x4 - core index']
  #allocation1 [shape = 'u32[144,128]{1,0:T(1,128)}', space=vmem, size = 0x12000, scoped, tag = 'internal scratch']
  %s0 = inlined_call_operand.hbm [shape: f32[8,128], index: 0, kind: input, shape index: {}]
  %s1 = inlined_call_operand.hbm [shape: f32[16,128], index: 1, kind: input, shape index: {}]
  %s2 = inlined_call_operand.hbm [shape: f32[8,16], index: 2, kind: input, shape index: {}]
  %s3 = inlined_call_operand.hbm [shape: bf16[128,128], index: 3, kind: input, shape index: {}]
  %s4 = inlined_call_operand.hbm [shape: bf16[128,256], index: 4, kind: input, shape index: {}]
  %s5 = inlined_call_operand.hbm [shape: bf16[128,128], index: 5, kind: input, shape index: {}]
  %s6 = inlined_call_operand.vmem [shape: f32[1,128], index: 6, kind: input, shape index: {}]
  %s7 = inlined_call_operand.vmem [shape: f32[1,128], index: 7, kind: input, shape index: {}]
  %s8 = inlined_call_operand.hbm [shape: bf16[128,256], index: 8, kind: input, shape index: {}]
  %s9 = inlined_call_operand.hbm [shape: bf16[8,128], index: 9, kind: output, shape index: {0}]
  %s10 = inlined_call_operand.hbm [shape: bf16[8,128], index: 10, kind: output, shape index: {1}]
  %11 = xla_tuple %s9, %s10
  %s12 = sld [smem:[#allocation0]]
  $region82: #{tpu_custom_call.1} parent=0
    _
  %s14 = ssub.s32 1, %s12
  %s15 = scalar_select 0, %s14, %s12
  $region1: #{tpu_custom_call.1} parent=0
    #allocation2 [shape = 'u8[4096]{0}', space=vmem, size = 0x1000, scoped, tag = 'input window, operand 0, single buffered']
    #allocation3 [shape = 's32[1]{0}', space=sflag, size = 0x4, scoped, tag = 'scoped memory for tpu_custom_call.1']
    #allocation4 [shape = 's32[1]{0}', space=sflag, size = 0x4, scoped, tag = 'scoped memory for tpu_custom_call.1']
    #allocation5 [shape = 'u8[8192]{0}', space=vmem, size = 0x2000, scoped, tag = 'input window, operand 1, single buffered']
    #allocation6 [shape = 's32[1]{0}', space=sflag, size = 0x4, scoped, tag = 'scoped memory for tpu_custom_call.1']
    #allocation7 [shape = 'u8[4096]{0}', space=vmem, size = 0x1000, scoped, tag = 'input window, operand 2, single buffered']
    #allocation8 [shape = 'u8[32768]{0}', space=vmem, size = 0x8000, scoped, tag = 'input window, operand 3, single buffered']
    #allocation9 [shape = 's32[1]{0}', space=sflag, size = 0x4, scoped, tag = 'scoped memory for tpu_custom_call.1']
    #allocation10 [shape = 'u8[65536]{0}', space=vmem, size = 0x10000, scoped, tag = 'input window, operand 4, single buffered']
    #allocation11 [shape = 'u8[32768]{0}', space=vmem, size = 0x8000, scoped, tag = 'input window, operand 5, single buffered']
    #allocation12 [shape = 's32[1]{0}', space=sflag, size = 0x4, scoped, tag = 'scoped memory for tpu_custom_call.1']
    #allocation13 [shape = 'u8[65536]{0}', space=vmem, size = 0x10000, scoped, tag = 'input window, operand 8, single buffered']
    #allocation14 [shape = 'u8[2048]{0}', space=vmem, size = 0x800, scoped, tag = 'output window, operand 0, single buffered']
    #allocation15 [shape = 'u8[2048]{0}', space=vmem, size = 0x800, scoped, tag = 'output window, operand 1, single buffered']
    #allocation16 [shape = 's32[1]{0}', space=sflag, size = 0x4, scoped, tag = 'scoped memory for tpu_custom_call.1']
    %16 = vsyncpa [#allocation3], 0
    %17 = vsyncpa [#allocation6], 0
    %18 = vsyncpa [#allocation9], 0
    %19 = vsyncpa [#allocation12], 0
    %20 = vsyncpa [#allocation4], 0
    %21 = vsyncpa [#allocation16], 0
    // Predicated region
    $region2: #{tpu_custom_call.1} parent=1 // pred_check
      _
    $region3: #{tpu_custom_call.1} parent=1 // pred_check_branch
      %23 = sbr.rel (0) target = $region5
    $region4: #{tpu_custom_call.1} parent=1 // pred_region
      %s25 = ssub.s32 128, 128
      %26 = vsyncadd [#allocation3], %s25
      %s28 = sshll.u32 [#allocation2], 4
      %s29 = int_to_ptr.vmem [resolvable:$true] %s28
      %31 = dma.hbm_to_vmem [thread:$0]  %s0, 128, %s29, [#allocation3]
    $region5: #{tpu_custom_call.1} parent=1 // pred_fallthru
      _
    // Predicated region
    $region6: #{tpu_custom_call.1} parent=1 // pred_check
      _
    $region7: #{tpu_custom_call.1} parent=1 // pred_check_branch
      %33 = sbr.rel (0) target = $region9
    $region8: #{tpu_custom_call.1} parent=1 // pred_region
      %s35 = ssub.s32 256, 256
      %36 = vsyncadd [#allocation6], %s35
      %s37 = sshll.u32 [#allocation5], 4
      %s38 = int_to_ptr.vmem [resolvable:$true] %s37
      %43 = dma.hbm_to_vmem [thread:$0]  %s1, 256, %s38, [#allocation6], 128, 128, 8
    $region9: #{tpu_custom_call.1} parent=1 // pred_fallthru
      _
    // Predicated region
    $region10: #{tpu_custom_call.1} parent=1 // pred_check
      _
    $region11: #{tpu_custom_call.1} parent=1 // pred_check_branch
      %45 = sbr.rel (0) target = $region13
    $region12: #{tpu_custom_call.1} parent=1 // pred_region
      %s47 = ssub.s32 128, 128
      %48 = vsyncadd [#allocation6], %s47
      %s50 = sshll.u32 [#allocation7], 4
      %s51 = int_to_ptr.vmem [resolvable:$true] %s50
      %53 = dma.hbm_to_vmem [thread:$0]  %s2, 128, %s51, [#allocation6]
    $region13: #{tpu_custom_call.1} parent=1 // pred_fallthru
      _
    // Predicated region
    $region14: #{tpu_custom_call.1} parent=1 // pred_check
      _
    $region15: #{tpu_custom_call.1} parent=1 // pred_check_branch
      %55 = sbr.rel (0) target = $region17
    $region16: #{tpu_custom_call.1} parent=1 // pred_region
      %s57 = ssub.s32 1024, 1024
      %58 = vsyncadd [#allocation9], %s57
      %s59 = sshll.u32 [#allocation8], 4
      %s60 = int_to_ptr.vmem [resolvable:$true] %s59
      %65 = dma.hbm_to_vmem [thread:$0]  %s3, 1024, %s60, [#allocation9], 64, 64, 4
    $region17: #{tpu_custom_call.1} parent=1 // pred_fallthru
      _
    // Predicated region
    $region18: #{tpu_custom_call.1} parent=1 // pred_check
      _
    $region19: #{tpu_custom_call.1} parent=1 // pred_check_branch
      %67 = sbr.rel (0) target = $region21
    $region20: #{tpu_custom_call.1} parent=1 // pred_region
      %s69 = ssub.s32 2048, 2048
      %70 = vsyncadd [#allocation9], %s69
      %s71 = sshll.u32 [#allocation10], 4
      %s72 = int_to_ptr.vmem [resolvable:$true] %s71
      %77 = dma.hbm_to_vmem [thread:$0]  %s4, 2048, %s72, [#allocation9], 128, 128, 8
    $region21: #{tpu_custom_call.1} parent=1 // pred_fallthru
      _
    // Predicated region
    $region22: #{tpu_custom_call.1} parent=1 // pred_check
      _
    $region23: #{tpu_custom_call.1} parent=1 // pred_check_branch
      %79 = sbr.rel (0) target = $region25
    $region24: #{tpu_custom_call.1} parent=1 // pred_region
      %s81 = ssub.s32 1024, 1024
      %82 = vsyncadd [#allocation12], %s81
      %s83 = sshll.u32 [#allocation11], 4
      %s84 = int_to_ptr.vmem [resolvable:$true] %s83
      %89 = dma.hbm_to_vmem [thread:$0]  %s5, 1024, %s84, [#allocation12], 64, 64, 4
    $region25: #{tpu_custom_call.1} parent=1 // pred_fallthru
      _
    // Predicated region
    $region26: #{tpu_custom_call.1} parent=1 // pred_check
      _
    $region27: #{tpu_custom_call.1} parent=1 // pred_check_branch
      %91 = sbr.rel (0) target = $region29
    $region28: #{tpu_custom_call.1} parent=1 // pred_region
      _
    $region29: #{tpu_custom_call.1} parent=1 // pred_fallthru
      _
    // Predicated region
    $region30: #{tpu_custom_call.1} parent=1 // pred_check
      _
    $region31: #{tpu_custom_call.1} parent=1 // pred_check_branch
      %93 = sbr.rel (0) target = $region33
    $region32: #{tpu_custom_call.1} parent=1 // pred_region
      _
    $region33: #{tpu_custom_call.1} parent=1 // pred_fallthru
      _
    // Predicated region
    $region34: #{tpu_custom_call.1} parent=1 // pred_check
      _
    $region35: #{tpu_custom_call.1} parent=1 // pred_check_branch
      %95 = sbr.rel (0) target = $region37
    $region36: #{tpu_custom_call.1} parent=1 // pred_region
      %s97 = ssub.s32 2048, 2048
      %98 = vsyncadd [#allocation12], %s97
      %s99 = sshll.u32 [#allocation13], 4
      %s100 = int_to_ptr.vmem [resolvable:$true] %s99
      %105 = dma.hbm_to_vmem [thread:$0]  %s8, 2048, %s100, [#allocation12], 128, 128, 8
    $region37: #{tpu_custom_call.1} parent=1 // pred_fallthru
      _
    // Predicated region
    $region38: #{tpu_custom_call.1} parent=1 // pred_check
      _
    $region39: #{tpu_custom_call.1} parent=1 // pred_check_branch
      %107 = sbr.rel (0) target = $region41
    $region40: #{tpu_custom_call.1} parent=1 // pred_region
      %108 = dma.done [#allocation3], 128
    $region41: #{tpu_custom_call.1} parent=1 // pred_fallthru
      _
    // Predicated region
    $region42: #{tpu_custom_call.1} parent=1 // pred_check
      _
    $region43: #{tpu_custom_call.1} parent=1 // pred_check_branch
      %110 = sbr.rel (0) target = $region45
    $region44: #{tpu_custom_call.1} parent=1 // pred_region
      %111 = dma.done [#allocation6], 256
    $region45: #{tpu_custom_call.1} parent=1 // pred_fallthru
      _
    // Predicated region
    $region46: #{tpu_custom_call.1} parent=1 // pred_check
      _
    $region47: #{tpu_custom_call.1} parent=1 // pred_check_branch
      %113 = sbr.rel (0) target = $region49
    $region48: #{tpu_custom_call.1} parent=1 // pred_region
      %114 = dma.done [#allocation6], 128
    $region49: #{tpu_custom_call.1} parent=1 // pred_fallthru
      _
    // Predicated region
    $region50: #{tpu_custom_call.1} parent=1 // pred_check
      _
    $region51: #{tpu_custom_call.1} parent=1 // pred_check_branch
      %116 = sbr.rel (0) target = $region53
    $region52: #{tpu_custom_call.1} parent=1 // pred_region
      %117 = dma.done [#allocation9], 1024
    $region53: #{tpu_custom_call.1} parent=1 // pred_fallthru
      _
    // Predicated region
    $region54: #{tpu_custom_call.1} parent=1 // pred_check
      _
    $region55: #{tpu_custom_call.1} parent=1 // pred_check_branch
      %119 = sbr.rel (0) target = $region57
    $region56: #{tpu_custom_call.1} parent=1 // pred_region
      %120 = dma.done [#allocation9], 2048
    $region57: #{tpu_custom_call.1} parent=1 // pred_fallthru
      _
    // Predicated region
    $region58: #{tpu_custom_call.1} parent=1 // pred_check
      _
    $region59: #{tpu_custom_call.1} parent=1 // pred_check_branch
      %122 = sbr.rel (0) target = $region61
    $region60: #{tpu_custom_call.1} parent=1 // pred_region
      %123 = dma.done [#allocation12], 1024
    $region61: #{tpu_custom_call.1} parent=1 // pred_fallthru
      _
    // Predicated region
    $region62: #{tpu_custom_call.1} parent=1 // pred_check
      _
    $region63: #{tpu_custom_call.1} parent=1 // pred_check_branch
      %125 = sbr.rel (0) target = $region65
    $region64: #{tpu_custom_call.1} parent=1 // pred_region
      %126 = dma.done [#allocation12], 2048
    $region65: #{tpu_custom_call.1} parent=1 // pred_fallthru
      _
    %v128 = vld [vmem:[#allocation2] sm:$0xff]
    %v129 = vld [vmem:[#allocation5] sm:$0xff]
    %v130 = vld [vmem:[#allocation5 + $0x8] sm:$0xff]
    %v131 = vld [vmem:[#allocation8] sm:$0xf]
    %v132 = vld [vmem:[#allocation8 + $0x4] sm:$0xf]
    %v133 = vld [vmem:[#allocation8 + $0x8] sm:$0xf]
    %v134 = vld [vmem:[#allocation8 + $0xc] sm:$0xf]
    %v135 = vld [vmem:[#allocation8 + $0x10] sm:$0xf]
    %v136 = vld [vmem:[#allocation8 + $0x14] sm:$0xf]
    %v137 = vld [vmem:[#allocation8 + $0x18] sm:$0xf]
    %v138 = vld [vmem:[#allocation8 + $0x1c] sm:$0xf]
    %v139 = vld [vmem:[#allocation8 + $0x20] sm:$0xf]
    %v140 = vld [vmem:[#allocation8 + $0x24] sm:$0xf]
    %v141 = vld [vmem:[#allocation8 + $0x28] sm:$0xf]
    %v142 = vld [vmem:[#allocation8 + $0x2c] sm:$0xf]
    %v143 = vld [vmem:[#allocation8 + $0x30] sm:$0xf]
    %v144 = vld [vmem:[#allocation8 + $0x34] sm:$0xf]
    %v145 = vld [vmem:[#allocation8 + $0x38] sm:$0xf]
    %v146 = vld [vmem:[#allocation8 + $0x3c] sm:$0xf]
    %v147 = vpack.c.bf16 %v128, %v128
    %v164 = vunpack.c.l.b16 %v131
    %v165 = vunpack.c.l.b16 %v132
    %v166 = vunpack.c.l.b16 %v133
    %v167 = vunpack.c.l.b16 %v134
    %v168 = vunpack.c.l.b16 %v135
    %v169 = vunpack.c.l.b16 %v136
    %v170 = vunpack.c.l.b16 %v137
    %v171 = vunpack.c.l.b16 %v138
    %v172 = vunpack.c.l.b16 %v139
    %v173 = vunpack.c.l.b16 %v140
    %v174 = vunpack.c.l.b16 %v141
    %v175 = vunpack.c.l.b16 %v142
    %v176 = vunpack.c.l.b16 %v143
    %v177 = vunpack.c.l.b16 %v144
    %v178 = vunpack.c.l.b16 %v145
    %v179 = vunpack.c.l.b16 %v146
    %v180 = vpack.c.b16 %v165, %v164
    %v181 = vpack.c.b16 %v167, %v166
    %v182 = vpack.c.b16 %v169, %v168
    %v183 = vpack.c.b16 %v171, %v170
    %v184 = vpack.c.b16 %v173, %v172
    %v185 = vpack.c.b16 %v175, %v174
    %v186 = vpack.c.b16 %v177, %v176
    %v187 = vpack.c.b16 %v179, %v178
    %196 = vmatprep.subr.bf16.mxu0 0
    %197 = vmatpush1.bf16.msra.mxu0 %v180
    %198 = vmatprep.subr.bf16.mxu0 0
    %199 = vmatpush1.bf16.msra.mxu0 %v181
    %200 = vmatprep.subr.bf16.mxu0 0
    %201 = vmatpush1.bf16.msra.mxu0 %v182
    %202 = vmatprep.subr.bf16.mxu0 0
    %203 = vmatpush1.bf16.msra.mxu0 %v183
    %204 = vmatprep.subr.bf16.mxu0 0
    %205 = vmatpush1.bf16.msra.mxu0 %v184
    %206 = vmatprep.subr.bf16.mxu0 0
    %207 = vmatpush1.bf16.msra.mxu0 %v185
    %208 = vmatprep.subr.bf16.mxu0 0
    %209 = vmatpush1.bf16.msra.mxu0 %v186
    %210 = vmatprep.subr.bf16.mxu0 0
    %211 = vmatpush1.bf16.msra.mxu0 %v187
    %212 = vmatprep.subr.bf16.mxu0 0
    %213 = vmatpush1.bf16.msra.mxu0 0
    %214 = vmatprep.subr.bf16.mxu0 0
    %215 = vmatpush1.bf16.msra.mxu0 0
    %216 = vmatprep.subr.bf16.mxu0 0
    %217 = vmatpush1.bf16.msra.mxu0 0
    %218 = vmatprep.subr.bf16.mxu0 0
    %219 = vmatpush1.bf16.msra.mxu0 0
    %220 = vmatprep.subr.bf16.mxu0 0
    %221 = vmatpush1.bf16.msra.mxu0 0
    %222 = vmatprep.subr.bf16.mxu0 0
    %223 = vmatpush1.bf16.msra.mxu0 0
    %224 = vmatprep.subr.bf16.mxu0 0
    %225 = vmatpush1.bf16.msra.mxu0 0
    %226 = vmatprep.subr.bf16.mxu0 0
    %227 = vmatpush1.bf16.msra.mxu0 0
    %228 = vmatprep.mubr.bf16.mxu0 0
    %229 = vmatmul.mubr.bf16.gmra.mrb[0].mxu0 %v147
    %v230 = vpop.f32.mrb[0].mxu0
    %v231 = vadd.f32 0.0, %v230
    %v232 = vpop.f32.mrb[0].mxu0
    %v233 = vpop.f32.mrb[0].mxu0
    %v234 = vpop.f32.mrb[0].mxu0
    %235 = vdwg.mxu0
    %v236 = vld [vmem:[#allocation10] sm:$0xff]
    %v237 = vld [vmem:[#allocation10 + $0x8] sm:$0xff]
    %v238 = vld [vmem:[#allocation10 + $0x10] sm:$0xff]
    %v239 = vld [vmem:[#allocation10 + $0x18] sm:$0xff]
    %v240 = vld [vmem:[#allocation10 + $0x20] sm:$0xff]
    %v241 = vld [vmem:[#allocation10 + $0x28] sm:$0xff]
    %v242 = vld [vmem:[#allocation10 + $0x30] sm:$0xff]
    %v243 = vld [vmem:[#allocation10 + $0x38] sm:$0xff]
    %v244 = vld [vmem:[#allocation10 + $0x40] sm:$0xff]
    %v245 = vld [vmem:[#allocation10 + $0x48] sm:$0xff]
    %v246 = vld [vmem:[#allocation10 + $0x50] sm:$0xff]
    %v247 = vld [vmem:[#allocation10 + $0x58] sm:$0xff]
    %v248 = vld [vmem:[#allocation10 + $0x60] sm:$0xff]
    %v249 = vld [vmem:[#allocation10 + $0x68] sm:$0xff]
    %v250 = vld [vmem:[#allocation10 + $0x70] sm:$0xff]
    %v251 = vld [vmem:[#allocation10 + $0x78] sm:$0xff]
    %v252 = vpack.c.bf16 %v130, %v129
    %v269 = vunpack.c.l.b16 %v236
    %v270 = vunpack.c.h.b16 %v236
    %v271 = vunpack.c.l.b16 %v237
    %v272 = vunpack.c.h.b16 %v237
    %v273 = vunpack.c.l.b16 %v238
    %v274 = vunpack.c.h.b16 %v238
    %v275 = vunpack.c.l.b16 %v239
    %v276 = vunpack.c.h.b16 %v239
    %v277 = vunpack.c.l.b16 %v240
    %v278 = vunpack.c.h.b16 %v240
    %v279 = vunpack.c.l.b16 %v241
    %v280 = vunpack.c.h.b16 %v241
    %v281 = vunpack.c.l.b16 %v242
    %v282 = vunpack.c.h.b16 %v242
    %v283 = vunpack.c.l.b16 %v243
    %v284 = vunpack.c.h.b16 %v243
    %v285 = vunpack.c.l.b16 %v244
    %v286 = vunpack.c.h.b16 %v244
    %v287 = vunpack.c.l.b16 %v245
    %v288 = vunpack.c.h.b16 %v245
    %v289 = vunpack.c.l.b16 %v246
    %v290 = vunpack.c.h.b16 %v246
    %v291 = vunpack.c.l.b16 %v247
    %v292 = vunpack.c.h.b16 %v247
    %v293 = vunpack.c.l.b16 %v248
    %v294 = vunpack.c.h.b16 %v248
    %v295 = vunpack.c.l.b16 %v249
    %v296 = vunpack.c.h.b16 %v249
    %v297 = vunpack.c.l.b16 %v250
    %v298 = vunpack.c.h.b16 %v250
    %v299 = vunpack.c.l.b16 %v251
    %v300 = vunpack.c.h.b16 %v251
    %v301 = vpack.c.b16 %v271, %v269
    %v302 = vpack.c.b16 %v272, %v270
    %v303 = vpack.c.b16 %v275, %v273
    %v304 = vpack.c.b16 %v276, %v274
    %v305 = vpack.c.b16 %v279, %v277
    %v306 = vpack.c.b16 %v280, %v278
    %v307 = vpack.c.b16 %v283, %v281
    %v308 = vpack.c.b16 %v284, %v282
    %v309 = vpack.c.b16 %v287, %v285
    %v310 = vpack.c.b16 %v288, %v286
    %v311 = vpack.c.b16 %v291, %v289
    %v312 = vpack.c.b16 %v292, %v290
    %v313 = vpack.c.b16 %v295, %v293
    %v314 = vpack.c.b16 %v296, %v294
    %v315 = vpack.c.b16 %v299, %v297
    %v316 = vpack.c.b16 %v300, %v298
    %333 = vmatprep.subr.bf16.mxu0 %v302
    %334 = vmatpush1.bf16.msra.mxu0 %v301
    %335 = vmatprep.subr.bf16.mxu0 %v304
    %336 = vmatpush1.bf16.msra.mxu0 %v303
    %337 = vmatprep.subr.bf16.mxu0 %v306
    %338 = vmatpush1.bf16.msra.mxu0 %v305
    %339 = vmatprep.subr.bf16.mxu0 %v308
    %340 = vmatpush1.bf16.msra.mxu0 %v307
    %341 = vmatprep.subr.bf16.mxu0 %v310
    %342 = vmatpush1.bf16.msra.mxu0 %v309
    %343 = vmatprep.subr.bf16.mxu0 %v312
    %344 = vmatpush1.bf16.msra.mxu0 %v311
    %345 = vmatprep.subr.bf16.mxu0 %v314
    %346 = vmatpush1.bf16.msra.mxu0 %v313
    %347 = vmatprep.subr.bf16.mxu0 %v316
    %348 = vmatpush1.bf16.msra.mxu0 %v315
    %349 = vmatprep.subr.bf16.mxu0 0
    %350 = vmatpush1.bf16.msra.mxu0 0
    %351 = vmatprep.subr.bf16.mxu0 0
    %352 = vmatpush1.bf16.msra.mxu0 0
    %353 = vmatprep.subr.bf16.mxu0 0
    %354 = vmatpush1.bf16.msra.mxu0 0
    %355 = vmatprep.subr.bf16.mxu0 0
    %356 = vmatpush1.bf16.msra.mxu0 0
    %357 = vmatprep.subr.bf16.mxu0 0
    %358 = vmatpush1.bf16.msra.mxu0 0
    %359 = vmatprep.subr.bf16.mxu0 0
    %360 = vmatpush1.bf16.msra.mxu0 0
    %361 = vmatprep.subr.bf16.mxu0 0
    %362 = vmatpush1.bf16.msra.mxu0 0
    %363 = vmatprep.subr.bf16.mxu0 0
    %364 = vmatpush1.bf16.msra.mxu0 0
    %365 = vmatprep.mubr.bf16.mxu0 0
    %366 = vmatmul.mubr.bf16.gmra.mrb[0].mxu0 %v252
    %v367 = vpop.f32.mrb[0].mxu0
    %v368 = vadd.f32 0.0, %v367
    %v369 = vpop.f32.mrb[0].mxu0
    %v370 = vadd.f32 0.0, %v369
    %v371 = vpop.f32.mrb[0].mxu0
    %v372 = vadd.f32 0.0, %v371
    %v373 = vpop.f32.mrb[0].mxu0
    %v374 = vadd.f32 0.0, %v373
    %375 = vdwg.mxu0
    %v376 = vpack.c.bf16 %v231, %v231
    %v377 = vpack.c.bf16 %v372, %v368
    %378 = vmatprep.subr.bf16.mxu0 0
    %379 = vmatpush1.bf16.xpose.msra.mxu0 %v377
    %380 = vmatprep.subr.bf16.mxu0 0
    %381 = vmatpush1.bf16.xpose.msra.mxu0 0
    %382 = vmatprep.subr.bf16.mxu0 0
    %383 = vmatpush1.bf16.xpose.msra.mxu0 0
    %384 = vmatprep.subr.bf16.mxu0 0
    %385 = vmatpush1.bf16.xpose.msra.mxu0 0
    %386 = vmatprep.subr.bf16.mxu0 0
    %387 = vmatpush1.bf16.xpose.msra.mxu0 0
    %388 = vmatprep.subr.bf16.mxu0 0
    %389 = vmatpush1.bf16.xpose.msra.mxu0 0
    %390 = vmatprep.subr.bf16.mxu0 0
    %391 = vmatpush1.bf16.xpose.msra.mxu0 0
    %392 = vmatprep.subr.bf16.mxu0 0
    %393 = vmatpush1.bf16.xpose.msra.mxu0 0
    %394 = vmatprep.subr.bf16.mxu0 0
    %395 = vmatpush1.bf16.xpose.msra.mxu0 0
    %396 = vmatprep.subr.bf16.mxu0 0
    %397 = vmatpush1.bf16.xpose.msra.mxu0 0
    %398 = vmatprep.subr.bf16.mxu0 0
    %399 = vmatpush1.bf16.xpose.msra.mxu0 0
    %400 = vmatprep.subr.bf16.mxu0 0
    %401 = vmatpush1.bf16.xpose.msra.mxu0 0
    %402 = vmatprep.subr.bf16.mxu0 0
    %403 = vmatpush1.bf16.xpose.msra.mxu0 0
    %404 = vmatprep.subr.bf16.mxu0 0
    %405 = vmatpush1.bf16.xpose.msra.mxu0 0
    %406 = vmatprep.subr.bf16.mxu0 0
    %407 = vmatpush1.bf16.xpose.msra.mxu0 0
    %408 = vmatprep.subr.bf16.mxu0 0
    %409 = vmatpush1.bf16.xpose.msra.mxu0 0
    %410 = vmatprep.mubr.bf16.mxu0 0
    %411 = vmatmul.mubr.bf16.gmra.mrb[0].mxu0 %v376
    %v412 = vpop.f32.mrb[0].mxu0
    %v413 = vadd.f32 0.0, %v412
    %v414 = vpop.f32.mrb[0].mxu0
    %v415 = vpop.f32.mrb[0].mxu0
    %v416 = vpop.f32.mrb[0].mxu0
    %417 = vdwg.mxu0
    %v418 = vmul.f32 %v413, 0.088388346
    %v419 = vld [vmem:[#allocation7] sm:$0xff]
    %v420 = vadd.f32 %v418, %v419
    %vm421 = vcmask 130048
    %v422 = vsel %vm421, %v420, -inf
    %423 = vmax.xlane.f32.xlu0 %v422
    %v424 = vpop.xlane.xlu0 %423
    %v425 = vsub.f32 %v420, %v424
    %v426 = vmul.f32 %v425, 1.442695
    %v427 = vpow.pop %v426
    %v428 = vsel %vm421, %v427, 0.0
    %429 = vadd.xlane.f32.xlu0 %v428
    %v430 = vpop.xlane.xlu0 %429
    %v431 = vrcp.pop %v430
    %v432 = vmul.f32 %v427, %v431
    %v433 = vpack.c.bf16 %v432, %v432
    %v434 = vpack.c.bf16 %v374, %v370
    %v436 = vsel %vm421, %v433, 0
    %438 = vmatprep.subr.bf16.mxu0 0
    %439 = vmatpush1.bf16.msra.mxu0 %v434
    %440 = vmatprep.subr.bf16.mxu0 0
    %441 = vmatpush1.bf16.msra.mxu0 0
    %442 = vmatprep.subr.bf16.mxu0 0
    %443 = vmatpush1.bf16.msra.mxu0 0
    %444 = vmatprep.subr.bf16.mxu0 0
    %445 = vmatpush1.bf16.msra.mxu0 0
    %446 = vmatprep.subr.bf16.mxu0 0
    %447 = vmatpush1.bf16.msra.mxu0 0
    %448 = vmatprep.subr.bf16.mxu0 0
    %449 = vmatpush1.bf16.msra.mxu0 0
    %450 = vmatprep.subr.bf16.mxu0 0
    %451 = vmatpush1.bf16.msra.mxu0 0
    %452 = vmatprep.subr.bf16.mxu0 0
    %453 = vmatpush1.bf16.msra.mxu0 0
    %454 = vmatprep.subr.bf16.mxu0 0
    %455 = vmatpush1.bf16.msra.mxu0 0
    %456 = vmatprep.subr.bf16.mxu0 0
    %457 = vmatpush1.bf16.msra.mxu0 0
    %458 = vmatprep.subr.bf16.mxu0 0
    %459 = vmatpush1.bf16.msra.mxu0 0
    %460 = vmatprep.subr.bf16.mxu0 0
    %461 = vmatpush1.bf16.msra.mxu0 0
    %462 = vmatprep.subr.bf16.mxu0 0
    %463 = vmatpush1.bf16.msra.mxu0 0
    %464 = vmatprep.subr.bf16.mxu0 0
    %465 = vmatpush1.bf16.msra.mxu0 0
    %466 = vmatprep.subr.bf16.mxu0 0
    %467 = vmatpush1.bf16.msra.mxu0 0
    %468 = vmatprep.subr.bf16.mxu0 0
    %469 = vmatpush1.bf16.msra.mxu0 0
    %470 = vmatprep.mubr.bf16.mxu0 0
    %471 = vmatmul.mubr.bf16.gmra.mrb[0].mxu0 %v436
    %v472 = vpop.f32.mrb[0].mxu0
    %v473 = vadd.f32 0.0, %v472
    %v474 = vpop.f32.mrb[0].mxu0
    %v475 = vpop.f32.mrb[0].mxu0
    %v476 = vpop.f32.mrb[0].mxu0
    %477 = vdwg.mxu0
    %v478 = vld [vmem:[#allocation11] sm:$0xf]
    %v479 = vld [vmem:[#allocation11 + $0x4] sm:$0xf]
    %v480 = vld [vmem:[#allocation11 + $0x8] sm:$0xf]
    %v481 = vld [vmem:[#allocation11 + $0xc] sm:$0xf]
    %v482 = vld [vmem:[#allocation11 + $0x10] sm:$0xf]
    %v483 = vld [vmem:[#allocation11 + $0x14] sm:$0xf]
    %v484 = vld [vmem:[#allocation11 + $0x18] sm:$0xf]
    %v485 = vld [vmem:[#allocation11 + $0x1c] sm:$0xf]
    %v486 = vld [vmem:[#allocation11 + $0x20] sm:$0xf]
    %v487 = vld [vmem:[#allocation11 + $0x24] sm:$0xf]
    %v488 = vld [vmem:[#allocation11 + $0x28] sm:$0xf]
    %v489 = vld [vmem:[#allocation11 + $0x2c] sm:$0xf]
    %v490 = vld [vmem:[#allocation11 + $0x30] sm:$0xf]
    %v491 = vld [vmem:[#allocation11 + $0x34] sm:$0xf]
    %v492 = vld [vmem:[#allocation11 + $0x38] sm:$0xf]
    %v493 = vld [vmem:[#allocation11 + $0x3c] sm:$0xf]
    %v494 = vpack.c.bf16 %v473, %v473
    %v511 = vunpack.c.l.b16 %v478
    %v512 = vunpack.c.l.b16 %v479
    %v513 = vunpack.c.l.b16 %v480
    %v514 = vunpack.c.l.b16 %v481
    %v515 = vunpack.c.l.b16 %v482
    %v516 = vunpack.c.l.b16 %v483
    %v517 = vunpack.c.l.b16 %v484
    %v518 = vunpack.c.l.b16 %v485
    %v519 = vunpack.c.l.b16 %v486
    %v520 = vunpack.c.l.b16 %v487
    %v521 = vunpack.c.l.b16 %v488
    %v522 = vunpack.c.l.b16 %v489
    %v523 = vunpack.c.l.b16 %v490
    %v524 = vunpack.c.l.b16 %v491
    %v525 = vunpack.c.l.b16 %v492
    %v526 = vunpack.c.l.b16 %v493
    %v527 = vpack.c.b16 %v512, %v511
    %v528 = vpack.c.b16 %v514, %v513
    %v529 = vpack.c.b16 %v516, %v515
    %v530 = vpack.c.b16 %v518, %v517
    %v531 = vpack.c.b16 %v520, %v519
    %v532 = vpack.c.b16 %v522, %v521
    %v533 = vpack.c.b16 %v524, %v523
    %v534 = vpack.c.b16 %v526, %v525
    %543 = vmatprep.subr.bf16.mxu0 0
    %544 = vmatpush1.bf16.msra.mxu0 %v527
    %545 = vmatprep.subr.bf16.mxu0 0
    %546 = vmatpush1.bf16.msra.mxu0 %v528
    %547 = vmatprep.subr.bf16.mxu0 0
    %548 = vmatpush1.bf16.msra.mxu0 %v529
    %549 = vmatprep.subr.bf16.mxu0 0
    %550 = vmatpush1.bf16.msra.mxu0 %v530
    %551 = vmatprep.subr.bf16.mxu0 0
    %552 = vmatpush1.bf16.msra.mxu0 %v531
    %553 = vmatprep.subr.bf16.mxu0 0
    %554 = vmatpush1.bf16.msra.mxu0 %v532
    %555 = vmatprep.subr.bf16.mxu0 0
    %556 = vmatpush1.bf16.msra.mxu0 %v533
    %557 = vmatprep.subr.bf16.mxu0 0
    %558 = vmatpush1.bf16.msra.mxu0 %v534
    %559 = vmatprep.subr.bf16.mxu0 0
    %560 = vmatpush1.bf16.msra.mxu0 0
    %561 = vmatprep.subr.bf16.mxu0 0
    %562 = vmatpush1.bf16.msra.mxu0 0
    %563 = vmatprep.subr.bf16.mxu0 0
    %564 = vmatpush1.bf16.msra.mxu0 0
    %565 = vmatprep.subr.bf16.mxu0 0
    %566 = vmatpush1.bf16.msra.mxu0 0
    %567 = vmatprep.subr.bf16.mxu0 0
    %568 = vmatpush1.bf16.msra.mxu0 0
    %569 = vmatprep.subr.bf16.mxu0 0
    %570 = vmatpush1.bf16.msra.mxu0 0
    %571 = vmatprep.subr.bf16.mxu0 0
    %572 = vmatpush1.bf16.msra.mxu0 0
    %573 = vmatprep.subr.bf16.mxu0 0
    %574 = vmatpush1.bf16.msra.mxu0 0
    %575 = vmatprep.mubr.bf16.mxu0 0
    %576 = vmatmul.mubr.bf16.gmra.mrb[0].mxu0 %v494
    %v577 = vpop.f32.mrb[0].mxu0
    %v578 = vadd.f32 0.0, %v577
    %v579 = vpop.f32.mrb[0].mxu0
    %v580 = vpop.f32.mrb[0].mxu0
    %v581 = vpop.f32.mrb[0].mxu0
    %582 = vdwg.mxu0
    %v583 = vadd.f32 %v128, %v578
    %v584 = vld [vmem:[%s6] sm:$0x1]
    %v585 = vld [vmem:[%s7] sm:$0x1]
    %586 = vadd.xlane.f32.xlu0 %v583
    %v587 = vpop.xlane.xlu0 %586
    %v588 = vrcp.pop 128.0
    %v589 = vmul.f32 %v587, %v588
    %v590 = vsub.f32 %v583, %v589
    %v591 = vmul.f32 %v590, %v590
    %592 = vadd.xlane.f32.xlu0 %v591
    %v593 = vpop.xlane.xlu0 %592
    %v594 = vmul.f32 %v593, %v588
    %v595 = vadd.f32 %v594, 1e-06
    %v596 = vrsqrt.pop %v595
    %v597 = vmul.f32 %v590, %v596
    %v599 = vlaneseq
    %v600 = vshrl.u32 %v599, 7
    %v601 = vsub.s32 0, %v600
    %v602 = vrot.slane %v584, %v601
    %v604 = vmul.f32 %v597, %v602
    %v606 = vlaneseq
    %v607 = vshrl.u32 %v606, 7
    %v608 = vsub.s32 0, %v607
    %v609 = vrot.slane %v585, %v608
    %v611 = vadd.f32 %v604, %v609
    %v612 = vld [vmem:[#allocation13] sm:$0xff]
    %v613 = vld [vmem:[#allocation13 + $0x8] sm:$0xff]
    %v614 = vld [vmem:[#allocation13 + $0x10] sm:$0xff]
    %v615 = vld [vmem:[#allocation13 + $0x18] sm:$0xff]
    %v616 = vld [vmem:[#allocation13 + $0x20] sm:$0xff]
    %v617 = vld [vmem:[#allocation13 + $0x28] sm:$0xff]
    %v618 = vld [vmem:[#allocation13 + $0x30] sm:$0xff]
    %v619 = vld [vmem:[#allocation13 + $0x38] sm:$0xff]
    %v620 = vld [vmem:[#allocation13 + $0x40] sm:$0xff]
    %v621 = vld [vmem:[#allocation13 + $0x48] sm:$0xff]
    %v622 = vld [vmem:[#allocation13 + $0x50] sm:$0xff]
    %v623 = vld [vmem:[#allocation13 + $0x58] sm:$0xff]
    %v624 = vld [vmem:[#allocation13 + $0x60] sm:$0xff]
    %v625 = vld [vmem:[#allocation13 + $0x68] sm:$0xff]
    %v626 = vld [vmem:[#allocation13 + $0x70] sm:$0xff]
    %v627 = vld [vmem:[#allocation13 + $0x78] sm:$0xff]
    %v628 = vpack.c.bf16 %v611, %v611
    %v645 = vunpack.c.l.b16 %v612
    %v646 = vunpack.c.h.b16 %v612
    %v647 = vunpack.c.l.b16 %v613
    %v648 = vunpack.c.h.b16 %v613
    %v649 = vunpack.c.l.b16 %v614
    %v650 = vunpack.c.h.b16 %v614
    %v651 = vunpack.c.l.b16 %v615
    %v652 = vunpack.c.h.b16 %v615
    %v653 = vunpack.c.l.b16 %v616
    %v654 = vunpack.c.h.b16 %v616
    %v655 = vunpack.c.l.b16 %v617
    %v656 = vunpack.c.h.b16 %v617
    %v657 = vunpack.c.l.b16 %v618
    %v658 = vunpack.c.h.b16 %v618
    %v659 = vunpack.c.l.b16 %v619
    %v660 = vunpack.c.h.b16 %v619
    %v661 = vunpack.c.l.b16 %v620
    %v662 = vunpack.c.h.b16 %v620
    %v663 = vunpack.c.l.b16 %v621
    %v664 = vunpack.c.h.b16 %v621
    %v665 = vunpack.c.l.b16 %v622
    %v666 = vunpack.c.h.b16 %v622
    %v667 = vunpack.c.l.b16 %v623
    %v668 = vunpack.c.h.b16 %v623
    %v669 = vunpack.c.l.b16 %v624
    %v670 = vunpack.c.h.b16 %v624
    %v671 = vunpack.c.l.b16 %v625
    %v672 = vunpack.c.h.b16 %v625
    %v673 = vunpack.c.l.b16 %v626
    %v674 = vunpack.c.h.b16 %v626
    %v675 = vunpack.c.l.b16 %v627
    %v676 = vunpack.c.h.b16 %v627
    %v677 = vpack.c.b16 %v647, %v645
    %v678 = vpack.c.b16 %v648, %v646
    %v679 = vpack.c.b16 %v651, %v649
    %v680 = vpack.c.b16 %v652, %v650
    %v681 = vpack.c.b16 %v655, %v653
    %v682 = vpack.c.b16 %v656, %v654
    %v683 = vpack.c.b16 %v659, %v657
    %v684 = vpack.c.b16 %v660, %v658
    %v685 = vpack.c.b16 %v663, %v661
    %v686 = vpack.c.b16 %v664, %v662
    %v687 = vpack.c.b16 %v667, %v665
    %v688 = vpack.c.b16 %v668, %v666
    %v689 = vpack.c.b16 %v671, %v669
    %v690 = vpack.c.b16 %v672, %v670
    %v691 = vpack.c.b16 %v675, %v673
    %v692 = vpack.c.b16 %v676, %v674
    %709 = vmatprep.subr.bf16.mxu0 %v678
    %710 = vmatpush1.bf16.msra.mxu0 %v677
    %711 = vmatprep.subr.bf16.mxu0 %v680
    %712 = vmatpush1.bf16.msra.mxu0 %v679
    %713 = vmatprep.subr.bf16.mxu0 %v682
    %714 = vmatpush1.bf16.msra.mxu0 %v681
    %715 = vmatprep.subr.bf16.mxu0 %v684
    %716 = vmatpush1.bf16.msra.mxu0 %v683
    %717 = vmatprep.subr.bf16.mxu0 %v686
    %718 = vmatpush1.bf16.msra.mxu0 %v685
    %719 = vmatprep.subr.bf16.mxu0 %v688
    %720 = vmatpush1.bf16.msra.mxu0 %v687
    %721 = vmatprep.subr.bf16.mxu0 %v690
    %722 = vmatpush1.bf16.msra.mxu0 %v689
    %723 = vmatprep.subr.bf16.mxu0 %v692
    %724 = vmatpush1.bf16.msra.mxu0 %v691
    %725 = vmatprep.subr.bf16.mxu0 0
    %726 = vmatpush1.bf16.msra.mxu0 0
    %727 = vmatprep.subr.bf16.mxu0 0
    %728 = vmatpush1.bf16.msra.mxu0 0
    %729 = vmatprep.subr.bf16.mxu0 0
    %730 = vmatpush1.bf16.msra.mxu0 0
    %731 = vmatprep.subr.bf16.mxu0 0
    %732 = vmatpush1.bf16.msra.mxu0 0
    %733 = vmatprep.subr.bf16.mxu0 0
    %734 = vmatpush1.bf16.msra.mxu0 0
    %735 = vmatprep.subr.bf16.mxu0 0
    %736 = vmatpush1.bf16.msra.mxu0 0
    %737 = vmatprep.subr.bf16.mxu0 0
    %738 = vmatpush1.bf16.msra.mxu0 0
    %739 = vmatprep.subr.bf16.mxu0 0
    %740 = vmatpush1.bf16.msra.mxu0 0
    %741 = vmatprep.mubr.bf16.mxu0 0
    %742 = vmatmul.mubr.bf16.gmra.mrb[0].mxu0 %v628
    %v743 = vpop.f32.mrb[0].mxu0
    %v744 = vadd.f32 0.0, %v743
    %v745 = vpop.f32.mrb[0].mxu0
    %v746 = vadd.f32 0.0, %v745
    %v747 = vpop.f32.mrb[0].mxu0
    %v748 = vpop.f32.mrb[0].mxu0
    %749 = vdwg.mxu0
    %v750 = vpack.c.bf16 %v744, %v744
    %751 = vst [vmem:[#allocation14] sm:$0xf] %v750
    %v752 = vpack.c.bf16 %v746, %v746
    %753 = vst [vmem:[#allocation15] sm:$0xf] %v752
    // Predicated region
    $region66: #{tpu_custom_call.1} parent=1 // pred_check
      _
    $region67: #{tpu_custom_call.1} parent=1 // pred_check_branch
      %755 = sbr.rel (0) target = $region69
    $region68: #{tpu_custom_call.1} parent=1 // pred_region
      %s757 = ssub.s32 64, 64
      %758 = vsyncadd [#allocation4], %s757
      %s760 = sshll.u32 [#allocation14], 4
      %s761 = int_to_ptr.vmem [resolvable:$true] %s760
      %763 = dma.vmem_to_hbm [thread:$0]  %s761, 64, %s9, [#allocation4]
    $region69: #{tpu_custom_call.1} parent=1 // pred_fallthru
      _
    // Predicated region
    $region70: #{tpu_custom_call.1} parent=1 // pred_check
      _
    $region71: #{tpu_custom_call.1} parent=1 // pred_check_branch
      %765 = sbr.rel (0) target = $region73
    $region72: #{tpu_custom_call.1} parent=1 // pred_region
      %s767 = ssub.s32 64, 64
      %768 = vsyncadd [#allocation16], %s767
      %s770 = sshll.u32 [#allocation15], 4
      %s771 = int_to_ptr.vmem [resolvable:$true] %s770
      %773 = dma.vmem_to_hbm [thread:$0]  %s771, 64, %s10, [#allocation16]
    $region73: #{tpu_custom_call.1} parent=1 // pred_fallthru
      _
    // Predicated region
    $region74: #{tpu_custom_call.1} parent=1 // pred_check
      _
    $region75: #{tpu_custom_call.1} parent=1 // pred_check_branch
      %775 = sbr.rel (0) target = $region77
    $region76: #{tpu_custom_call.1} parent=1 // pred_region
      %776 = dma.done [#allocation4], 64
    $region77: #{tpu_custom_call.1} parent=1 // pred_fallthru
      _
    // Predicated region
    $region78: #{tpu_custom_call.1} parent=1 // pred_check
      _
    $region79: #{tpu_custom_call.1} parent=1 // pred_check_branch
      %778 = sbr.rel (0) target = $region81
    $region80: #{tpu_custom_call.1} parent=1 // pred_region
      %779 = dma.done [#allocation16], 64
    $region81: #{tpu_custom_call.1} parent=1 // pred_fallthru
      _
    %780 = vsyncpa [#allocation3], 1
    %781 = vsyncpa [#allocation6], 1
    %782 = vsyncpa [#allocation9], 1
    %783 = vsyncpa [#allocation12], 1
    %784 = vsyncpa [#allocation4], 1
    %785 = vsyncpa [#allocation16], 1

</llo_original>
